<compile_context>
chip_gen: v7x
topology: tpu7x:2x2x1
jax: 0.10.0
libtpu: 0.0.40
codegen_flags: <defaults>
</compile_context>

<pallas_src>
import math

import jax
import jax.numpy as jnp
from jax.experimental import pallas as pl
from jax.experimental.pallas import tpu as pltpu


def _round_up(n, m):
    return ((n + m - 1) // m) * m


def _make_kernel(tk, xw_resident, use_scratch):
    """Build the (row-tile, k-tile) adj @ xw kernel body."""

    def load_xw(xw_ref):
        if xw_resident:
            # Full xw lives in VMEM (constant block index); slice the k-chunk.
            start = pl.multiple_of(pl.program_id(1) * tk, tk)
            return xw_ref[pl.ds(start, tk), :]
        return xw_ref[...]

    if use_scratch:
        # Narrow output dtype: accumulate in a float32 VMEM scratch.
        def kernel(adj_ref, xw_ref, o_ref, acc_ref):
            part = jnp.dot(adj_ref[...], load_xw(xw_ref),
                           preferred_element_type=jnp.float32)

            @pl.when(pl.program_id(1) == 0)
            def _init():
                acc_ref[...] = part

            @pl.when(pl.program_id(1) != 0)
            def _accumulate():
                acc_ref[...] += part

            @pl.when(pl.program_id(1) == pl.num_programs(1) - 1)
            def _finalize():
                o_ref[...] = acc_ref[...].astype(o_ref.dtype)

        return kernel

    # float32 output: accumulate directly into the (k-resident) output block.
    def kernel(adj_ref, xw_ref, o_ref):
        part = jnp.dot(adj_ref[...], load_xw(xw_ref),
                       preferred_element_type=jnp.float32)

        @pl.when(pl.program_id(1) == 0)
        def _init():
            o_ref[...] = part

        @pl.when(pl.program_id(1) != 0)
        def _accumulate():
            o_ref[...] += part

    return kernel


def graph_convolution(x, adj, w, *, tm=512, tk=None, compute_dtype=None,
                      xw_resident=None):
    """Pallas implementation of `adj @ x @ w` (GraphConvolution.forward)."""
    N, f_in = x.shape
    f_out = w.shape[1]
    assert adj.shape == (N, N)
    assert w.shape[0] == f_in

    out_dtype = x.dtype

    # Hoisted small matmul, computed ONCE in XLA: [N, F_in] @ [F_in, F_out].
    xw = jnp.dot(x, w, preferred_element_type=jnp.float32).astype(out_dtype)

    if compute_dtype is not None:
        # NOTE: casting adj here costs a full extra HBM pass over N^2 elements;
        # pre-cast adj in the caller to avoid it (then this is a no-op).
        if adj.dtype != compute_dtype:
            adj = adj.astype(compute_dtype)
        xw = xw.astype(compute_dtype)

    cbytes = jnp.dtype(adj.dtype).itemsize
    obytes = jnp.dtype(out_dtype).itemsize

    # Tile defaults sized so each step moves >= ~2 MiB of adj (HBM-bound).
    if tk is None:
        tk = 2048 if cbytes <= 2 else 1024

    sublane = 16 if cbytes <= 2 else 8  # 16-bit dtypes pack 16 sublanes/vreg
    tm = max(sublane, min(tm, _round_up(N, sublane)))
    tm = _round_up(tm, sublane)
    tk = max(128, min(tk, _round_up(N, 128)))
    tk = _round_up(tk, 128)

    n_rows = _round_up(N, tm)        # padded row count of adj / out
    n_k = _round_up(N, tk)           # padded contraction dim
    f_out_p = _round_up(f_out, 128)  # lane-dense output / xw width

    # Pad adj ONLY when the tiles don't divide N (no-op in the common case).
    # Zero K-padding keeps the extra columns mathematically inert.
    if (n_rows, n_k) != (N, N):
        adj_p = jnp.pad(adj, ((0, n_rows - N), (0, n_k - N)))
    else:
        adj_p = adj
    if (n_k, f_out_p) != (N, f_out):
        xw_p = jnp.pad(xw, ((0, n_k - N), (0, f_out_p - f_out)))
    else:
        xw_p = xw

    grid = (n_rows // tm, n_k // tk)

    # Keep xw fully VMEM-resident when it is small (few MiB): constant block
    # index -> Pallas DMAs it once and never re-streams it per row tile.
    if xw_resident is None:
        xw_resident = n_k * f_out_p * cbytes <= 8 * 1024 * 1024

    use_scratch = out_dtype != jnp.float32

    if xw_resident:
        xw_spec = pl.BlockSpec((n_k, f_out_p), lambda i, k: (0, 0))
        xw_buf_bytes = 2 * n_k * f_out_p * cbytes
        xw_hbm_bytes = n_k * f_out_p * cbytes
    else:
        xw_spec = pl.BlockSpec((tk, f_out_p), lambda i, k: (k, 0))
        xw_buf_bytes = 2 * tk * f_out_p * cbytes
        xw_hbm_bytes = grid[0] * n_k * f_out_p * cbytes

    scratch_shapes = []
    acc_bytes = 0
    if use_scratch:
        scratch_shapes.append(pltpu.VMEM((tm, f_out_p), jnp.float32))
        acc_bytes = tm * f_out_p * 4

    # Double-buffered adj + xw buffers + double-buffered output + accumulator.
    vmem_needed = (2 * tm * tk * cbytes + xw_buf_bytes
                   + 2 * tm * f_out_p * obytes + acc_bytes)

    try:
        phys_vmem = int(pltpu.get_tpu_info().vmem_capacity_bytes)
    except Exception:
        phys_vmem = 64 * 1024 * 1024  # conservative: v7x per-TC VMEM
    vmem_cap = (phys_vmem * 5) // 8   # leave headroom for compiler scratch
    vmem_limit = int(min(max(2 * vmem_needed, 32 * 1024 * 1024), vmem_cap))
    vmem_limit = int(max(vmem_limit, min(vmem_needed + (2 << 20), phys_vmem)))

    cost = pl.CostEstimate(
        flops=2 * n_rows * n_k * f_out_p,
        transcendentals=0,
        bytes_accessed=(
            n_rows * n_k * cbytes            # adj (dominant stream)
            + xw_hbm_bytes                   # xw (once if resident)
            + n_rows * f_out_p * obytes      # output
        ),
    )

    out_p = pl.pallas_call(
        _make_kernel(tk, xw_resident, use_scratch),
        out_shape=jax.ShapeDtypeStruct((n_rows, f_out_p), out_dtype),
        grid_spec=pltpu.PrefetchScalarGridSpec(
            num_scalar_prefetch=0,
            grid=grid,
            in_specs=[
                pl.BlockSpec((tm, tk), lambda i, k: (i, k)),
                xw_spec,
            ],
            out_specs=pl.BlockSpec((tm, f_out_p), lambda i, k: (i, 0)),
            scratch_shapes=scratch_shapes,
        ),
        compiler_params=pltpu.CompilerParams(
            dimension_semantics=("parallel", "arbitrary"),
            vmem_limit_bytes=vmem_limit,
        ),
        cost_estimate=cost,
    )(adj_p, xw_p)

    if (n_rows, f_out_p) != (N, f_out):
        out_p = out_p[:N, :f_out]
    return out_p


def init_weight(key, num_in, num_out, dtype=jnp.float32):
    # nn.init.xavier_normal_: std = gain * sqrt(2 / (fan_in + fan_out)), gain=1
    std = math.sqrt(2.0 / (num_in + num_out))
    return (jax.random.normal(key, (num_in, num_out)) * std).astype(dtype)


if __name__ == "__main__":
    key = jax.random.PRNGKey(0)
    k_x, k_adj, k_w = jax.random.split(key, 3)

    N, num_in, num_out = 256, 64, 32

    x = jax.random.normal(k_x, (N, num_in), dtype=jnp.float32)
    # dense synthetic "adjacency" (any real-valued matrix works, as in the module)
    adj = jax.random.normal(k_adj, (N, N), dtype=jnp.float32)
    w = init_weight(k_w, num_in, num_out)

    ref = adj @ (x @ w)

    # 1) Default config: pad-free adj path, resident xw, direct f32 output
    #    accumulation (single k tile at this small N).
    out = jax.block_until_ready(graph_convolution(x, adj, w))
    assert out.shape == (N, num_out)
    assert jnp.allclose(out, ref, atol=1e-2, rtol=1e-3), "f32 default mismatch"

    # 2) Small tiles: exercises the multi-k accumulation grid and streamed xw.
    out2 = jax.block_until_ready(
        graph_convolution(x, adj, w, tm=128, tk=128, xw_resident=False))
    assert jnp.allclose(out2, ref, atol=1e-2, rtol=1e-3), "f32 tiled mismatch"

    # 3) bf16 bandwidth path: inputs pre-cast by the caller (no extra adj pass);
    #    bf16 output exercises the f32 scratch-accumulator variant.
    x_b = x.astype(jnp.bfloat16)
    adj_b = adj.astype(jnp.bfloat16)
    w_b = w.astype(jnp.bfloat16)
    out3 = jax.block_until_ready(
        graph_convolution(x_b, adj_b, w_b, tm=128, tk=128))
    xw_b = jnp.dot(x_b, w_b,
                   preferred_element_type=jnp.float32).astype(jnp.bfloat16)
    ref_b = jnp.dot(adj_b, xw_b, preferred_element_type=jnp.float32)
    assert out3.shape == (N, num_out)
    assert jnp.allclose(out3.astype(jnp.float32), ref_b, atol=5e-1, rtol=5e-2), (
        "bf16 mismatch vs bf16-consistent reference")

    print("KERNEL_OK")
</pallas_src>

<mosaic_0001>
module attributes {stable_mosaic.version = 11 : i64} {
  func.func @kernel(%arg0: i32, %arg1: i32, %arg2: memref<256x256xf32, #tpu.memory_space<vmem>>, %arg3: memref<256x128xf32, #tpu.memory_space<vmem>>, %arg4: memref<256x128xf32, #tpu.memory_space<vmem>>) attributes {dimension_semantics = [#tpu.dimension_semantics<parallel>, #tpu.dimension_semantics<arbitrary>], iteration_bounds = array<i64: 1, 1>, scalar_prefetch = 0 : i64, scratch_operands = 0 : i64, tpu.core_type = #tpu.core_type<tc>, window_params = [{transform_indices = @transform_0, window_bounds = array<i64: 256, 256>}, {pipeline_mode = #tpu.pipeline_mode<synchronous>, transform_indices = @transform_1, window_bounds = array<i64: 256, 128>}, {transform_indices = @transform_2, window_bounds = array<i64: 256, 128>}]} {
    %c0 = arith.constant 0 : index
    %c0_0 = arith.constant 0 : index
    %0 = vector.load %arg2[%c0, %c0_0] : memref<256x256xf32, #tpu.memory_space<vmem>>, vector<256x256xf32>
    %c256_i32 = arith.constant 256 : i32
    %1 = arith.muli %arg1, %c256_i32 : i32
    %2 = tpu.assume_multiple %1, 256 : i32
    %3 = arith.index_cast %2 : i32 to index
    %c0_1 = arith.constant 0 : index
    %4 = vector.load %arg3[%3, %c0_1] : memref<256x128xf32, #tpu.memory_space<vmem>>, vector<256x128xf32>
    %cst = arith.constant dense<0.000000e+00> : vector<256x128xf32>
    %5 = tpu.matmul %0, %4, %cst {dimension_numbers = #tpu.dot_dimension_numbers<[1], [0], [0], [1], [0, 0, 1, 1], [], []>} : vector<256x256xf32>, vector<256x128xf32>, vector<256x128xf32> -> vector<256x128xf32>
    %c0_i32 = arith.constant 0 : i32
    %6 = arith.cmpi eq, %arg1, %c0_i32 : i32
    %7 = arith.extui %6 : i1 to i32
    %c0_i32_2 = arith.constant 0 : i32
    %8 = arith.cmpi ne, %7, %c0_i32_2 : i32
    scf.if %8 {
      %c0_5 = arith.constant 0 : index
      %c0_6 = arith.constant 0 : index
      %12 = vector.load %arg4[%c0_5, %c0_6] : memref<256x128xf32, #tpu.memory_space<vmem>>, vector<256x128xf32>
      tpu.vector_store %arg4[%c0_5, %c0_6], %5 {strides = array<i32>} : memref<256x128xf32, #tpu.memory_space<vmem>>, vector<256x128xf32>,
    } else {
    }
    %c0_i32_3 = arith.constant 0 : i32
    %9 = arith.cmpi ne, %arg1, %c0_i32_3 : i32
    %10 = arith.extui %9 : i1 to i32
    %c0_i32_4 = arith.constant 0 : i32
    %11 = arith.cmpi ne, %10, %c0_i32_4 : i32
    scf.if %11 {
      %c0_5 = arith.constant 0 : index
      %c0_6 = arith.constant 0 : index
      %12 = vector.load %arg4[%c0_5, %c0_6] : memref<256x128xf32, #tpu.memory_space<vmem>>, vector<256x128xf32>
      %13 = arith.addf %12, %5 : vector<256x128xf32>
      %c0_7 = arith.constant 0 : index
      %c0_8 = arith.constant 0 : index
      %14 = vector.load %arg4[%c0_7, %c0_8] : memref<256x128xf32, #tpu.memory_space<vmem>>, vector<256x128xf32>
      tpu.vector_store %arg4[%c0_7, %c0_8], %13 {strides = array<i32>} : memref<256x128xf32, #tpu.memory_space<vmem>>, vector<256x128xf32>,
    } else {
    }
    return
  }
  func.func @transform_0(%arg0: i32, %arg1: i32) -> (i32, i32) {
    %c0_i32 = arith.constant 0 : i32
    return %arg0, %arg1 : i32, i32
  }
  func.func @transform_1(%arg0: i32, %arg1: i32) -> (i32, i32) {
    %c0_i32 = arith.constant 0 : i32
    %c0_i32_0 = arith.constant 0 : i32
    %c0_i32_1 = arith.constant 0 : i32
    return %c0_i32, %c0_i32_0 : i32, i32
  }
  func.func @transform_2(%arg0: i32, %arg1: i32) -> (i32, i32) {
    %c0_i32 = arith.constant 0 : i32
    %c0_i32_0 = arith.constant 0 : i32
    return %arg0, %c0_i32 : i32, i32
  }
}

</mosaic_0001>

<llo_original>
// kernel: tpu_custom_call.1
$region0: #{tpu_custom_call.1}
  #allocation0 [shape = 'u32[]', space=smem, size = 0x4, offset = 0x4, fixed_abs, tag = 'smem constant byte address 0x4 - core index']
  #allocation1 [shape = 'u32[144,128]{1,0:T(1,128)}', space=vmem, size = 0x12000, scoped, tag = 'internal scratch']
  %s0 = inlined_call_operand.hbm [shape: f32[256,256], index: 0, kind: input, shape index: {}]
  %s1 = inlined_call_operand.hbm [shape: f32[256,128], index: 1, kind: input, shape index: {}]
  %s2 = inlined_call_operand.hbm [shape: f32[256,128], index: 2, kind: output, shape index: {}]
  %s3 = sld [smem:[#allocation0]]
  $region34: #{tpu_custom_call.1} parent=0
    _
  %s5 = ssub.s32 1, %s3
  %s6 = scalar_select 0, %s5, %s3
  $region1: #{tpu_custom_call.1} parent=0
    #allocation2 [shape = 'u8[262144]{0}', space=vmem, size = 0x40000, scoped, tag = 'input window, operand 0, single buffered']
    #allocation3 [shape = 's32[1]{0}', space=sflag, size = 0x4, scoped, tag = 'scoped memory for tpu_custom_call.1']
    #allocation4 [shape = 's32[1]{0}', space=sflag, size = 0x4, scoped, tag = 'scoped memory for tpu_custom_call.1']
    #allocation5 [shape = 'u8[131072]{0}', space=vmem, size = 0x20000, scoped, tag = 'input window, operand 1, single buffered']
    #allocation6 [shape = 's32[1]{0}', space=sflag, size = 0x4, scoped, tag = 'scoped memory for tpu_custom_call.1']
    #allocation7 [shape = 'u8[131072]{0}', space=vmem, size = 0x20000, scoped, tag = 'output window, operand 0, single buffered']
    %7 = vsyncpa [#allocation3], 0
    %8 = vsyncpa [#allocation6], 0
    %9 = vsyncpa [#allocation4], 0
    // Predicated region
    $region2: #{tpu_custom_call.1} parent=1 // pred_check
      _
    $region3: #{tpu_custom_call.1} parent=1 // pred_check_branch
      %11 = sbr.rel (0) target = $region5
    $region4: #{tpu_custom_call.1} parent=1 // pred_region
      %s13 = ssub.s32 8192, 8192
      %14 = vsyncadd [#allocation3], %s13
      %s15 = sshll.u32 [#allocation2], 4
      %s16 = int_to_ptr.vmem [resolvable:$true] %s15
      %21 = dma.hbm_to_vmem [thread:$0]  %s0, 8192, %s16, [#allocation3], 256, 256, 16
    $region5: #{tpu_custom_call.1} parent=1 // pred_fallthru
      _
    // Predicated region
    $region6: #{tpu_custom_call.1} parent=1 // pred_check
      _
    $region7: #{tpu_custom_call.1} parent=1 // pred_check_branch
      %23 = sbr.rel (0) target = $region9
    $region8: #{tpu_custom_call.1} parent=1 // pred_region
      %s25 = ssub.s32 4096, 4096
      %26 = vsyncadd [#allocation6], %s25
      %s27 = sshll.u32 [#allocation5], 4
      %s28 = int_to_ptr.vmem [resolvable:$true] %s27
      %33 = dma.hbm_to_vmem [thread:$0]  %s1, 4096, %s28, [#allocation6], 128, 128, 8
    $region9: #{tpu_custom_call.1} parent=1 // pred_fallthru
      _
    // Predicated region
    $region10: #{tpu_custom_call.1} parent=1 // pred_check
      _
    $region11: #{tpu_custom_call.1} parent=1 // pred_check_branch
      %35 = sbr.rel (0) target = $region13
    $region12: #{tpu_custom_call.1} parent=1 // pred_region
      %36 = dma.done [#allocation3], 8192
    $region13: #{tpu_custom_call.1} parent=1 // pred_fallthru
      _
    // Predicated region
    $region14: #{tpu_custom_call.1} parent=1 // pred_check
      _
    $region15: #{tpu_custom_call.1} parent=1 // pred_check_branch
      %38 = sbr.rel (0) target = $region17
    $region16: #{tpu_custom_call.1} parent=1 // pred_region
      %39 = dma.done [#allocation6], 4096
    $region17: #{tpu_custom_call.1} parent=1 // pred_fallthru
      _
    %v40 = vld [vmem:[#allocation2] sm:$0xff]
    %v41 = vld [vmem:[#allocation2 + $0x8] sm:$0xff]
    %v42 = vld [vmem:[#allocation2 + $0x10] sm:$0xff]
    %v43 = vld [vmem:[#allocation2 + $0x18] sm:$0xff]
    %v44 = vld [vmem:[#allocation2 + $0x20] sm:$0xff]
    %v45 = vld [vmem:[#allocation2 + $0x28] sm:$0xff]
    %v46 = vld [vmem:[#allocation2 + $0x30] sm:$0xff]
    %v47 = vld [vmem:[#allocation2 + $0x38] sm:$0xff]
    %v48 = vld [vmem:[#allocation2 + $0x40] sm:$0xff]
    %v49 = vld [vmem:[#allocation2 + $0x48] sm:$0xff]
    %v50 = vld [vmem:[#allocation2 + $0x50] sm:$0xff]
    %v51 = vld [vmem:[#allocation2 + $0x58] sm:$0xff]
    %v52 = vld [vmem:[#allocation2 + $0x60] sm:$0xff]
    %v53 = vld [vmem:[#allocation2 + $0x68] sm:$0xff]
    %v54 = vld [vmem:[#allocation2 + $0x70] sm:$0xff]
    %v55 = vld [vmem:[#allocation2 + $0x78] sm:$0xff]
    %v56 = vld [vmem:[#allocation2 + $0x80] sm:$0xff]
    %v57 = vld [vmem:[#allocation2 + $0x88] sm:$0xff]
    %v58 = vld [vmem:[#allocation2 + $0x90] sm:$0xff]
    %v59 = vld [vmem:[#allocation2 + $0x98] sm:$0xff]
    %v60 = vld [vmem:[#allocation2 + $0xa0] sm:$0xff]
    %v61 = vld [vmem:[#allocation2 + $0xa8] sm:$0xff]
    %v62 = vld [vmem:[#allocation2 + $0xb0] sm:$0xff]
    %v63 = vld [vmem:[#allocation2 + $0xb8] sm:$0xff]
    %v64 = vld [vmem:[#allocation2 + $0xc0] sm:$0xff]
    %v65 = vld [vmem:[#allocation2 + $0xc8] sm:$0xff]
    %v66 = vld [vmem:[#allocation2 + $0xd0] sm:$0xff]
    %v67 = vld [vmem:[#allocation2 + $0xd8] sm:$0xff]
    %v68 = vld [vmem:[#allocation2 + $0xe0] sm:$0xff]
    %v69 = vld [vmem:[#allocation2 + $0xe8] sm:$0xff]
    %v70 = vld [vmem:[#allocation2 + $0xf0] sm:$0xff]
    %v71 = vld [vmem:[#allocation2 + $0xf8] sm:$0xff]
    %v72 = vld [vmem:[#allocation2 + $0x100] sm:$0xff]
    %v73 = vld [vmem:[#allocation2 + $0x108] sm:$0xff]
    %v74 = vld [vmem:[#allocation2 + $0x110] sm:$0xff]
    %v75 = vld [vmem:[#allocation2 + $0x118] sm:$0xff]
    %v76 = vld [vmem:[#allocation2 + $0x120] sm:$0xff]
    %v77 = vld [vmem:[#allocation2 + $0x128] sm:$0xff]
    %v78 = vld [vmem:[#allocation2 + $0x130] sm:$0xff]
    %v79 = vld [vmem:[#allocation2 + $0x138] sm:$0xff]
    %v80 = vld [vmem:[#allocation2 + $0x140] sm:$0xff]
    %v81 = vld [vmem:[#allocation2 + $0x148] sm:$0xff]
    %v82 = vld [vmem:[#allocation2 + $0x150] sm:$0xff]
    %v83 = vld [vmem:[#allocation2 + $0x158] sm:$0xff]
    %v84 = vld [vmem:[#allocation2 + $0x160] sm:$0xff]
    %v85 = vld [vmem:[#allocation2 + $0x168] sm:$0xff]
    %v86 = vld [vmem:[#allocation2 + $0x170] sm:$0xff]
    %v87 = vld [vmem:[#allocation2 + $0x178] sm:$0xff]
    %v88 = vld [vmem:[#allocation2 + $0x180] sm:$0xff]
    %v89 = vld [vmem:[#allocation2 + $0x188] sm:$0xff]
    %v90 = vld [vmem:[#allocation2 + $0x190] sm:$0xff]
    %v91 = vld [vmem:[#allocation2 + $0x198] sm:$0xff]
    %v92 = vld [vmem:[#allocation2 + $0x1a0] sm:$0xff]
    %v93 = vld [vmem:[#allocation2 + $0x1a8] sm:$0xff]
    %v94 = vld [vmem:[#allocation2 + $0x1b0] sm:$0xff]
    %v95 = vld [vmem:[#allocation2 + $0x1b8] sm:$0xff]
    %v96 = vld [vmem:[#allocation2 + $0x1c0] sm:$0xff]
    %v97 = vld [vmem:[#allocation2 + $0x1c8] sm:$0xff]
    %v98 = vld [vmem:[#allocation2 + $0x1d0] sm:$0xff]
    %v99 = vld [vmem:[#allocation2 + $0x1d8] sm:$0xff]
    %v100 = vld [vmem:[#allocation2 + $0x1e0] sm:$0xff]
    %v101 = vld [vmem:[#allocation2 + $0x1e8] sm:$0xff]
    %v102 = vld [vmem:[#allocation2 + $0x1f0] sm:$0xff]
    %v103 = vld [vmem:[#allocation2 + $0x1f8] sm:$0xff]
    %s104 = smul.u32 0, 256
    %s105 = scalar_lea.vmem [#allocation5], %s104
    %v106 = vld [vmem:[%s105] sm:$0xff]
    %v107 = vld [vmem:[%s105 + $0x8] sm:$0xff]
    %v108 = vld [vmem:[%s105 + $0x10] sm:$0xff]
    %v109 = vld [vmem:[%s105 + $0x18] sm:$0xff]
    %v110 = vld [vmem:[%s105 + $0x20] sm:$0xff]
    %v111 = vld [vmem:[%s105 + $0x28] sm:$0xff]
    %v112 = vld [vmem:[%s105 + $0x30] sm:$0xff]
    %v113 = vld [vmem:[%s105 + $0x38] sm:$0xff]
    %v114 = vld [vmem:[%s105 + $0x40] sm:$0xff]
    %v115 = vld [vmem:[%s105 + $0x48] sm:$0xff]
    %v116 = vld [vmem:[%s105 + $0x50] sm:$0xff]
    %v117 = vld [vmem:[%s105 + $0x58] sm:$0xff]
    %v118 = vld [vmem:[%s105 + $0x60] sm:$0xff]
    %v119 = vld [vmem:[%s105 + $0x68] sm:$0xff]
    %v120 = vld [vmem:[%s105 + $0x70] sm:$0xff]
    %v121 = vld [vmem:[%s105 + $0x78] sm:$0xff]
    %v122 = vld [vmem:[%s105 + $0x80] sm:$0xff]
    %v123 = vld [vmem:[%s105 + $0x88] sm:$0xff]
    %v124 = vld [vmem:[%s105 + $0x90] sm:$0xff]
    %v125 = vld [vmem:[%s105 + $0x98] sm:$0xff]
    %v126 = vld [vmem:[%s105 + $0xa0] sm:$0xff]
    %v127 = vld [vmem:[%s105 + $0xa8] sm:$0xff]
    %v128 = vld [vmem:[%s105 + $0xb0] sm:$0xff]
    %v129 = vld [vmem:[%s105 + $0xb8] sm:$0xff]
    %v130 = vld [vmem:[%s105 + $0xc0] sm:$0xff]
    %v131 = vld [vmem:[%s105 + $0xc8] sm:$0xff]
    %v132 = vld [vmem:[%s105 + $0xd0] sm:$0xff]
    %v133 = vld [vmem:[%s105 + $0xd8] sm:$0xff]
    %v134 = vld [vmem:[%s105 + $0xe0] sm:$0xff]
    %v135 = vld [vmem:[%s105 + $0xe8] sm:$0xff]
    %v136 = vld [vmem:[%s105 + $0xf0] sm:$0xff]
    %v137 = vld [vmem:[%s105 + $0xf8] sm:$0xff]
    %138 = vmatprep.subr.mxu0 0.0
    %139 = vmatpush1.msra.mxu0 %v106
    %140 = vmatprep.subr.mxu0 0.0
    %141 = vmatpush1.msra.mxu0 %v107
    %142 = vmatprep.subr.mxu0 0.0
    %143 = vmatpush1.msra.mxu0 %v108
    %144 = vmatprep.subr.mxu0 0.0
    %145 = vmatpush1.msra.mxu0 %v109
    %146 = vmatprep.subr.mxu0 0.0
    %147 = vmatpush1.msra.mxu0 %v110
    %148 = vmatprep.subr.mxu0 0.0
    %149 = vmatpush1.msra.mxu0 %v111
    %150 = vmatprep.subr.mxu0 0.0
    %151 = vmatpush1.msra.mxu0 %v112
    %152 = vmatprep.subr.mxu0 0.0
    %153 = vmatpush1.msra.mxu0 %v113
    %154 = vmatprep.subr.mxu0 0.0
    %155 = vmatpush1.msra.mxu0 %v114
    %156 = vmatprep.subr.mxu0 0.0
    %157 = vmatpush1.msra.mxu0 %v115
    %158 = vmatprep.subr.mxu0 0.0
    %159 = vmatpush1.msra.mxu0 %v116
    %160 = vmatprep.subr.mxu0 0.0
    %161 = vmatpush1.msra.mxu0 %v117
    %162 = vmatprep.subr.mxu0 0.0
    %163 = vmatpush1.msra.mxu0 %v118
    %164 = vmatprep.subr.mxu0 0.0
    %165 = vmatpush1.msra.mxu0 %v119
    %166 = vmatprep.subr.mxu0 0.0
    %167 = vmatpush1.msra.mxu0 %v120
    %168 = vmatprep.subr.mxu0 0.0
    %169 = vmatpush1.msra.mxu0 %v121
    %170 = vmatprep.subr.mxu0 0.0
    %171 = vmatpush1.msra.mxu0 %v122
    %172 = vmatprep.subr.mxu0 0.0
    %173 = vmatpush1.msra.mxu0 %v123
    %174 = vmatprep.subr.mxu0 0.0
    %175 = vmatpush1.msra.mxu0 %v124
    %176 = vmatprep.subr.mxu0 0.0
    %177 = vmatpush1.msra.mxu0 %v125
    %178 = vmatprep.subr.mxu0 0.0
    %179 = vmatpush1.msra.mxu0 %v126
    %180 = vmatprep.subr.mxu0 0.0
    %181 = vmatpush1.msra.mxu0 %v127
    %182 = vmatprep.subr.mxu0 0.0
    %183 = vmatpush1.msra.mxu0 %v128
    %184 = vmatprep.subr.mxu0 0.0
    %185 = vmatpush1.msra.mxu0 %v129
    %186 = vmatprep.subr.mxu0 0.0
    %187 = vmatpush1.msra.mxu0 %v130
    %188 = vmatprep.subr.mxu0 0.0
    %189 = vmatpush1.msra.mxu0 %v131
    %190 = vmatprep.subr.mxu0 0.0
    %191 = vmatpush1.msra.mxu0 %v132
    %192 = vmatprep.subr.mxu0 0.0
    %193 = vmatpush1.msra.mxu0 %v133
    %194 = vmatprep.subr.mxu0 0.0
    %195 = vmatpush1.msra.mxu0 %v134
    %196 = vmatprep.subr.mxu0 0.0
    %197 = vmatpush1.msra.mxu0 %v135
    %198 = vmatprep.subr.mxu0 0.0
    %199 = vmatpush1.msra.mxu0 %v136
    %200 = vmatprep.subr.mxu0 0.0
    %201 = vmatpush1.msra.mxu0 %v137
    %202 = vmatprep.mubr.f32.mxu0 %v41
    %203 = vmatmul.mubr.f32.gmra.mrb[0].mxu0 %v40
    %v204 = vpop.f32.mrb[0].mxu0
    %v205 = vadd.f32 0.0, %v204
    %v206 = vpop.f32.mrb[0].mxu0
    %207 = vmatprep.mubr.f32.mxu0 %v43
    %208 = vmatmul.mubr.f32.gmra.mrb[0].mxu0 %v42
    %v209 = vpop.f32.mrb[0].mxu0
    %v210 = vadd.f32 0.0, %v209
    %v211 = vpop.f32.mrb[0].mxu0
    %212 = vmatprep.mubr.f32.mxu0 %v45
    %213 = vmatmul.mubr.f32.gmra.mrb[0].mxu0 %v44
    %v214 = vpop.f32.mrb[0].mxu0
    %v215 = vadd.f32 0.0, %v214
    %v216 = vpop.f32.mrb[0].mxu0
    %217 = vmatprep.mubr.f32.mxu0 %v47
    %218 = vmatmul.mubr.f32.gmra.mrb[0].mxu0 %v46
    %v219 = vpop.f32.mrb[0].mxu0
    %v220 = vadd.f32 0.0, %v219
    %v221 = vpop.f32.mrb[0].mxu0
    %222 = vmatprep.mubr.f32.mxu0 %v49
    %223 = vmatmul.mubr.f32.gmra.mrb[0].mxu0 %v48
    %v224 = vpop.f32.mrb[0].mxu0
    %v225 = vadd.f32 0.0, %v224
    %v226 = vpop.f32.mrb[0].mxu0
    %227 = vmatprep.mubr.f32.mxu0 %v51
    %228 = vmatmul.mubr.f32.gmra.mrb[0].mxu0 %v50
    %v229 = vpop.f32.mrb[0].mxu0
    %v230 = vadd.f32 0.0, %v229
    %v231 = vpop.f32.mrb[0].mxu0
    %232 = vmatprep.mubr.f32.mxu0 %v53
    %233 = vmatmul.mubr.f32.gmra.mrb[0].mxu0 %v52
    %v234 = vpop.f32.mrb[0].mxu0
    %v235 = vadd.f32 0.0, %v234
    %v236 = vpop.f32.mrb[0].mxu0
    %237 = vmatprep.mubr.f32.mxu0 %v55
    %238 = vmatmul.mubr.f32.gmra.mrb[0].mxu0 %v54
    %v239 = vpop.f32.mrb[0].mxu0
    %v240 = vadd.f32 0.0, %v239
    %v241 = vpop.f32.mrb[0].mxu0
    %242 = vmatprep.mubr.f32.mxu0 %v57
    %243 = vmatmul.mubr.f32.gmra.mrb[0].mxu0 %v56
    %v244 = vpop.f32.mrb[0].mxu0
    %v245 = vadd.f32 0.0, %v244
    %v246 = vpop.f32.mrb[0].mxu0
    %247 = vmatprep.mubr.f32.mxu0 %v59
    %248 = vmatmul.mubr.f32.gmra.mrb[0].mxu0 %v58
    %v249 = vpop.f32.mrb[0].mxu0
    %v250 = vadd.f32 0.0, %v249
    %v251 = vpop.f32.mrb[0].mxu0
    %252 = vmatprep.mubr.f32.mxu0 %v61
    %253 = vmatmul.mubr.f32.gmra.mrb[0].mxu0 %v60
    %v254 = vpop.f32.mrb[0].mxu0
    %v255 = vadd.f32 0.0, %v254
    %v256 = vpop.f32.mrb[0].mxu0
    %257 = vmatprep.mubr.f32.mxu0 %v63
    %258 = vmatmul.mubr.f32.gmra.mrb[0].mxu0 %v62
    %v259 = vpop.f32.mrb[0].mxu0
    %v260 = vadd.f32 0.0, %v259
    %v261 = vpop.f32.mrb[0].mxu0
    %262 = vmatprep.mubr.f32.mxu0 %v65
    %263 = vmatmul.mubr.f32.gmra.mrb[0].mxu0 %v64
    %v264 = vpop.f32.mrb[0].mxu0
    %v265 = vadd.f32 0.0, %v264
    %v266 = vpop.f32.mrb[0].mxu0
    %267 = vmatprep.mubr.f32.mxu0 %v67
    %268 = vmatmul.mubr.f32.gmra.mrb[0].mxu0 %v66
    %v269 = vpop.f32.mrb[0].mxu0
    %v270 = vadd.f32 0.0, %v269
    %v271 = vpop.f32.mrb[0].mxu0
    %272 = vmatprep.mubr.f32.mxu0 %v69
    %273 = vmatmul.mubr.f32.gmra.mrb[0].mxu0 %v68
    %v274 = vpop.f32.mrb[0].mxu0
    %v275 = vadd.f32 0.0, %v274
    %v276 = vpop.f32.mrb[0].mxu0
    %277 = vmatprep.mubr.f32.mxu0 %v71
    %278 = vmatmul.mubr.f32.gmra.mrb[0].mxu0 %v70
    %v279 = vpop.f32.mrb[0].mxu0
    %v280 = vadd.f32 0.0, %v279
    %v281 = vpop.f32.mrb[0].mxu0
    %282 = vmatprep.mubr.f32.mxu0 %v73
    %283 = vmatmul.mubr.f32.gmra.mrb[0].mxu0 %v72
    %v284 = vpop.f32.mrb[0].mxu0
    %v285 = vadd.f32 0.0, %v284
    %v286 = vpop.f32.mrb[0].mxu0
    %287 = vmatprep.mubr.f32.mxu0 %v75
    %288 = vmatmul.mubr.f32.gmra.mrb[0].mxu0 %v74
    %v289 = vpop.f32.mrb[0].mxu0
    %v290 = vadd.f32 0.0, %v289
    %v291 = vpop.f32.mrb[0].mxu0
    %292 = vmatprep.mubr.f32.mxu0 %v77
    %293 = vmatmul.mubr.f32.gmra.mrb[0].mxu0 %v76
    %v294 = vpop.f32.mrb[0].mxu0
    %v295 = vadd.f32 0.0, %v294
    %v296 = vpop.f32.mrb[0].mxu0
    %297 = vmatprep.mubr.f32.mxu0 %v79
    %298 = vmatmul.mubr.f32.gmra.mrb[0].mxu0 %v78
    %v299 = vpop.f32.mrb[0].mxu0
    %v300 = vadd.f32 0.0, %v299
    %v301 = vpop.f32.mrb[0].mxu0
    %302 = vmatprep.mubr.f32.mxu0 %v81
    %303 = vmatmul.mubr.f32.gmra.mrb[0].mxu0 %v80
    %v304 = vpop.f32.mrb[0].mxu0
    %v305 = vadd.f32 0.0, %v304
    %v306 = vpop.f32.mrb[0].mxu0
    %307 = vmatprep.mubr.f32.mxu0 %v83
    %308 = vmatmul.mubr.f32.gmra.mrb[0].mxu0 %v82
    %v309 = vpop.f32.mrb[0].mxu0
    %v310 = vadd.f32 0.0, %v309
    %v311 = vpop.f32.mrb[0].mxu0
    %312 = vmatprep.mubr.f32.mxu0 %v85
    %313 = vmatmul.mubr.f32.gmra.mrb[0].mxu0 %v84
    %v314 = vpop.f32.mrb[0].mxu0
    %v315 = vadd.f32 0.0, %v314
    %v316 = vpop.f32.mrb[0].mxu0
    %317 = vmatprep.mubr.f32.mxu0 %v87
    %318 = vmatmul.mubr.f32.gmra.mrb[0].mxu0 %v86
    %v319 = vpop.f32.mrb[0].mxu0
    %v320 = vadd.f32 0.0, %v319
    %v321 = vpop.f32.mrb[0].mxu0
    %322 = vmatprep.mubr.f32.mxu0 %v89
    %323 = vmatmul.mubr.f32.gmra.mrb[0].mxu0 %v88
    %v324 = vpop.f32.mrb[0].mxu0
    %v325 = vadd.f32 0.0, %v324
    %v326 = vpop.f32.mrb[0].mxu0
    %327 = vmatprep.mubr.f32.mxu0 %v91
    %328 = vmatmul.mubr.f32.gmra.mrb[0].mxu0 %v90
    %v329 = vpop.f32.mrb[0].mxu0
    %v330 = vadd.f32 0.0, %v329
    %v331 = vpop.f32.mrb[0].mxu0
    %332 = vmatprep.mubr.f32.mxu0 %v93
    %333 = vmatmul.mubr.f32.gmra.mrb[0].mxu0 %v92
    %v334 = vpop.f32.mrb[0].mxu0
    %v335 = vadd.f32 0.0, %v334
    %v336 = vpop.f32.mrb[0].mxu0
    %337 = vmatprep.mubr.f32.mxu0 %v95
    %338 = vmatmul.mubr.f32.gmra.mrb[0].mxu0 %v94
    %v339 = vpop.f32.mrb[0].mxu0
    %v340 = vadd.f32 0.0, %v339
    %v341 = vpop.f32.mrb[0].mxu0
    %342 = vmatprep.mubr.f32.mxu0 %v97
    %343 = vmatmul.mubr.f32.gmra.mrb[0].mxu0 %v96
    %v344 = vpop.f32.mrb[0].mxu0
    %v345 = vadd.f32 0.0, %v344
    %v346 = vpop.f32.mrb[0].mxu0
    %347 = vmatprep.mubr.f32.mxu0 %v99
    %348 = vmatmul.mubr.f32.gmra.mrb[0].mxu0 %v98
    %v349 = vpop.f32.mrb[0].mxu0
    %v350 = vadd.f32 0.0, %v349
    %v351 = vpop.f32.mrb[0].mxu0
    %352 = vmatprep.mubr.f32.mxu0 %v101
    %353 = vmatmul.mubr.f32.gmra.mrb[0].mxu0 %v100
    %v354 = vpop.f32.mrb[0].mxu0
    %v355 = vadd.f32 0.0, %v354
    %v356 = vpop.f32.mrb[0].mxu0
    %357 = vmatprep.mubr.f32.mxu0 %v103
    %358 = vmatmul.mubr.f32.gmra.mrb[0].mxu0 %v102
    %v359 = vpop.f32.mrb[0].mxu0
    %v360 = vadd.f32 0.0, %v359
    %v361 = vpop.f32.mrb[0].mxu0
    %362 = vdwg.mxu0
    %p363 = scmp.eq.s32.totalorder 0, 0
    // Predicated region
    $region18: #{tpu_custom_call.1} parent=1 // pred_check
      %p364 = pneg %p363
    $region19: #{tpu_custom_call.1} parent=1 // pred_check_branch
      %366 = sbr.rel (%p364) target = $region21
    $region20: #{tpu_custom_call.1} parent=1 // pred_region
      %367 = vst [vmem:[#allocation7] sm:$0xff] %v205
      %368 = vst [vmem:[#allocation7 + $0x8] sm:$0xff] %v210
      %369 = vst [vmem:[#allocation7 + $0x10] sm:$0xff] %v215
      %370 = vst [vmem:[#allocation7 + $0x18] sm:$0xff] %v220
      %371 = vst [vmem:[#allocation7 + $0x20] sm:$0xff] %v225
      %372 = vst [vmem:[#allocation7 + $0x28] sm:$0xff] %v230
      %373 = vst [vmem:[#allocation7 + $0x30] sm:$0xff] %v235
      %374 = vst [vmem:[#allocation7 + $0x38] sm:$0xff] %v240
      %375 = vst [vmem:[#allocation7 + $0x40] sm:$0xff] %v245
      %376 = vst [vmem:[#allocation7 + $0x48] sm:$0xff] %v250
      %377 = vst [vmem:[#allocation7 + $0x50] sm:$0xff] %v255
      %378 = vst [vmem:[#allocation7 + $0x58] sm:$0xff] %v260
      %379 = vst [vmem:[#allocation7 + $0x60] sm:$0xff] %v265
      %380 = vst [vmem:[#allocation7 + $0x68] sm:$0xff] %v270
      %381 = vst [vmem:[#allocation7 + $0x70] sm:$0xff] %v275
      %382 = vst [vmem:[#allocation7 + $0x78] sm:$0xff] %v280
      %383 = vst [vmem:[#allocation7 + $0x80] sm:$0xff] %v285
      %384 = vst [vmem:[#allocation7 + $0x88] sm:$0xff] %v290
      %385 = vst [vmem:[#allocation7 + $0x90] sm:$0xff] %v295
      %386 = vst [vmem:[#allocation7 + $0x98] sm:$0xff] %v300
      %387 = vst [vmem:[#allocation7 + $0xa0] sm:$0xff] %v305
      %388 = vst [vmem:[#allocation7 + $0xa8] sm:$0xff] %v310
      %389 = vst [vmem:[#allocation7 + $0xb0] sm:$0xff] %v315
      %390 = vst [vmem:[#allocation7 + $0xb8] sm:$0xff] %v320
      %391 = vst [vmem:[#allocation7 + $0xc0] sm:$0xff] %v325
      %392 = vst [vmem:[#allocation7 + $0xc8] sm:$0xff] %v330
      %393 = vst [vmem:[#allocation7 + $0xd0] sm:$0xff] %v335
      %394 = vst [vmem:[#allocation7 + $0xd8] sm:$0xff] %v340
      %395 = vst [vmem:[#allocation7 + $0xe0] sm:$0xff] %v345
      %396 = vst [vmem:[#allocation7 + $0xe8] sm:$0xff] %v350
      %397 = vst [vmem:[#allocation7 + $0xf0] sm:$0xff] %v355
      %398 = vst [vmem:[#allocation7 + $0xf8] sm:$0xff] %v360
    $region21: #{tpu_custom_call.1} parent=1 // pred_fallthru
      _
    %p399 = scmp.ne.s32.totalorder 0, 0
    // Predicated region
    $region22: #{tpu_custom_call.1} parent=1 // pred_check
      %p400 = pneg %p399
    $region23: #{tpu_custom_call.1} parent=1 // pred_check_branch
      %402 = sbr.rel (%p400) target = $region25
    $region24: #{tpu_custom_call.1} parent=1 // pred_region
      %v403 = vld [vmem:[#allocation7] sm:$0xff]
      %v404 = vld [vmem:[#allocation7 + $0x8] sm:$0xff]
      %v405 = vld [vmem:[#allocation7 + $0x10] sm:$0xff]
      %v406 = vld [vmem:[#allocation7 + $0x18] sm:$0xff]
      %v407 = vld [vmem:[#allocation7 + $0x20] sm:$0xff]
      %v408 = vld [vmem:[#allocation7 + $0x28] sm:$0xff]
      %v409 = vld [vmem:[#allocation7 + $0x30] sm:$0xff]
      %v410 = vld [vmem:[#allocation7 + $0x38] sm:$0xff]
      %v411 = vld [vmem:[#allocation7 + $0x40] sm:$0xff]
      %v412 = vld [vmem:[#allocation7 + $0x48] sm:$0xff]
      %v413 = vld [vmem:[#allocation7 + $0x50] sm:$0xff]
      %v414 = vld [vmem:[#allocation7 + $0x58] sm:$0xff]
      %v415 = vld [vmem:[#allocation7 + $0x60] sm:$0xff]
      %v416 = vld [vmem:[#allocation7 + $0x68] sm:$0xff]
      %v417 = vld [vmem:[#allocation7 + $0x70] sm:$0xff]
      %v418 = vld [vmem:[#allocation7 + $0x78] sm:$0xff]
      %v419 = vld [vmem:[#allocation7 + $0x80] sm:$0xff]
      %v420 = vld [vmem:[#allocation7 + $0x88] sm:$0xff]
      %v421 = vld [vmem:[#allocation7 + $0x90] sm:$0xff]
      %v422 = vld [vmem:[#allocation7 + $0x98] sm:$0xff]
      %v423 = vld [vmem:[#allocation7 + $0xa0] sm:$0xff]
      %v424 = vld [vmem:[#allocation7 + $0xa8] sm:$0xff]
      %v425 = vld [vmem:[#allocation7 + $0xb0] sm:$0xff]
      %v426 = vld [vmem:[#allocation7 + $0xb8] sm:$0xff]
      %v427 = vld [vmem:[#allocation7 + $0xc0] sm:$0xff]
      %v428 = vld [vmem:[#allocation7 + $0xc8] sm:$0xff]
      %v429 = vld [vmem:[#allocation7 + $0xd0] sm:$0xff]
      %v430 = vld [vmem:[#allocation7 + $0xd8] sm:$0xff]
      %v431 = vld [vmem:[#allocation7 + $0xe0] sm:$0xff]
      %v432 = vld [vmem:[#allocation7 + $0xe8] sm:$0xff]
      %v433 = vld [vmem:[#allocation7 + $0xf0] sm:$0xff]
      %v434 = vld [vmem:[#allocation7 + $0xf8] sm:$0xff]
      %v435 = vadd.f32 %v403, %v205
      %v436 = vadd.f32 %v404, %v210
      %v437 = vadd.f32 %v405, %v215
      %v438 = vadd.f32 %v406, %v220
      %v439 = vadd.f32 %v407, %v225
      %v440 = vadd.f32 %v408, %v230
      %v441 = vadd.f32 %v409, %v235
      %v442 = vadd.f32 %v410, %v240
      %v443 = vadd.f32 %v411, %v245
      %v444 = vadd.f32 %v412, %v250
      %v445 = vadd.f32 %v413, %v255
      %v446 = vadd.f32 %v414, %v260
      %v447 = vadd.f32 %v415, %v265
      %v448 = vadd.f32 %v416, %v270
      %v449 = vadd.f32 %v417, %v275
      %v450 = vadd.f32 %v418, %v280
      %v451 = vadd.f32 %v419, %v285
      %v452 = vadd.f32 %v420, %v290
      %v453 = vadd.f32 %v421, %v295
      %v454 = vadd.f32 %v422, %v300
      %v455 = vadd.f32 %v423, %v305
      %v456 = vadd.f32 %v424, %v310
      %v457 = vadd.f32 %v425, %v315
      %v458 = vadd.f32 %v426, %v320
      %v459 = vadd.f32 %v427, %v325
      %v460 = vadd.f32 %v428, %v330
      %v461 = vadd.f32 %v429, %v335
      %v462 = vadd.f32 %v430, %v340
      %v463 = vadd.f32 %v431, %v345
      %v464 = vadd.f32 %v432, %v350
      %v465 = vadd.f32 %v433, %v355
      %v466 = vadd.f32 %v434, %v360
      %467 = vst [vmem:[#allocation7] sm:$0xff] %v435
      %468 = vst [vmem:[#allocation7 + $0x8] sm:$0xff] %v436
      %469 = vst [vmem:[#allocation7 + $0x10] sm:$0xff] %v437
      %470 = vst [vmem:[#allocation7 + $0x18] sm:$0xff] %v438
      %471 = vst [vmem:[#allocation7 + $0x20] sm:$0xff] %v439
      %472 = vst [vmem:[#allocation7 + $0x28] sm:$0xff] %v440
      %473 = vst [vmem:[#allocation7 + $0x30] sm:$0xff] %v441
      %474 = vst [vmem:[#allocation7 + $0x38] sm:$0xff] %v442
      %475 = vst [vmem:[#allocation7 + $0x40] sm:$0xff] %v443
      %476 = vst [vmem:[#allocation7 + $0x48] sm:$0xff] %v444
      %477 = vst [vmem:[#allocation7 + $0x50] sm:$0xff] %v445
      %478 = vst [vmem:[#allocation7 + $0x58] sm:$0xff] %v446
      %479 = vst [vmem:[#allocation7 + $0x60] sm:$0xff] %v447
      %480 = vst [vmem:[#allocation7 + $0x68] sm:$0xff] %v448
      %481 = vst [vmem:[#allocation7 + $0x70] sm:$0xff] %v449
      %482 = vst [vmem:[#allocation7 + $0x78] sm:$0xff] %v450
      %483 = vst [vmem:[#allocation7 + $0x80] sm:$0xff] %v451
      %484 = vst [vmem:[#allocation7 + $0x88] sm:$0xff] %v452
      %485 = vst [vmem:[#allocation7 + $0x90] sm:$0xff] %v453
      %486 = vst [vmem:[#allocation7 + $0x98] sm:$0xff] %v454
      %487 = vst [vmem:[#allocation7 + $0xa0] sm:$0xff] %v455
      %488 = vst [vmem:[#allocation7 + $0xa8] sm:$0xff] %v456
      %489 = vst [vmem:[#allocation7 + $0xb0] sm:$0xff] %v457
      %490 = vst [vmem:[#allocation7 + $0xb8] sm:$0xff] %v458
      %491 = vst [vmem:[#allocation7 + $0xc0] sm:$0xff] %v459
      %492 = vst [vmem:[#allocation7 + $0xc8] sm:$0xff] %v460
      %493 = vst [vmem:[#allocation7 + $0xd0] sm:$0xff] %v461
      %494 = vst [vmem:[#allocation7 + $0xd8] sm:$0xff] %v462
      %495 = vst [vmem:[#allocation7 + $0xe0] sm:$0xff] %v463
      %496 = vst [vmem:[#allocation7 + $0xe8] sm:$0xff] %v464
      %497 = vst [vmem:[#allocation7 + $0xf0] sm:$0xff] %v465
      %498 = vst [vmem:[#allocation7 + $0xf8] sm:$0xff] %v466
    $region25: #{tpu_custom_call.1} parent=1 // pred_fallthru
      _
    // Predicated region
    $region26: #{tpu_custom_call.1} parent=1 // pred_check
      _
    $region27: #{tpu_custom_call.1} parent=1 // pred_check_branch
      %500 = sbr.rel (0) target = $region29
    $region28: #{tpu_custom_call.1} parent=1 // pred_region
      %s502 = ssub.s32 4096, 4096
      %503 = vsyncadd [#allocation4], %s502
      %s504 = sshll.u32 [#allocation7], 4
      %s505 = int_to_ptr.vmem [resolvable:$true] %s504
      %510 = dma.vmem_to_hbm [thread:$0]  %s505, 4096, %s2, [#allocation4], 128, 128, 8
    $region29: #{tpu_custom_call.1} parent=1 // pred_fallthru
      _
    // Predicated region
    $region30: #{tpu_custom_call.1} parent=1 // pred_check
      _
    $region31: #{tpu_custom_call.1} parent=1 // pred_check_branch
      %512 = sbr.rel (0) target = $region33
    $region32: #{tpu_custom_call.1} parent=1 // pred_region
      %513 = dma.done [#allocation4], 4096
    $region33: #{tpu_custom_call.1} parent=1 // pred_fallthru
      _
    %514 = vsyncpa [#allocation3], 1
    %515 = vsyncpa [#allocation6], 1
    %516 = vsyncpa [#allocation4], 1

</llo_original>
